<compile_context>
chip_gen: v5e
topology: v5e:2x2
jax: 0.10.0
libtpu: 0.0.40
codegen_flags: <defaults>
</compile_context>

<pallas_src>
import jax
import jax.numpy as jnp
import numpy as np
from jax.experimental import pallas as pl
from jax.experimental.pallas import tpu as pltpu


def _round_up(x, m):
    return ((x + m - 1) // m) * m


def _net3d_embed_kernel(coords_ref, mask_ref, out_ref, acc_ref, cnt_ref):
    """Masked mean pooling over the point-cloud axis, accumulated over L tiles.

    coords_ref: (3, TB, TL) f32 VMEM   -- xyz channel leading, batch on sublanes,
                                          points on lanes.
    mask_ref  : (TB, TL)    f32 VMEM   -- 1.0 = valid point, 0.0 = padding.
    out_ref   : (TB, 128)   f32 VMEM   -- lanes 0..2 hold the (x, y, z) mean.
    acc_ref   : (3, TB, 1)  f32 VMEM scratch -- running masked coordinate sums.
    cnt_ref   : (TB, 1)     f32 VMEM scratch -- running valid-point counts.
    """
    l = pl.program_id(1)

    @pl.when(l == 0)
    def _init():
        acc_ref[...] = jnp.zeros_like(acc_ref)
        cnt_ref[...] = jnp.zeros_like(cnt_ref)

    c = coords_ref[...]                               # (3, TB, TL)
    m = mask_ref[...]                                 # (TB, TL)

    # Lane-axis reductions (XLU); accumulate in f32 scratch across L tiles.
    acc_ref[...] += jnp.sum(c * m[None, :, :], axis=-1, keepdims=True)   # (3, TB, 1)
    cnt_ref[...] += jnp.sum(m, axis=-1, keepdims=True)                   # (TB, 1)

    @pl.when(l == pl.num_programs(1) - 1)
    def _finalize():
        # Guard fully-masked / padded clouds; approx reciprocal uses the EUP slot.
        denom = jnp.maximum(cnt_ref[...], 1.0)                           # (TB, 1)
        inv = pl.reciprocal(denom, approx=True)                          # (TB, 1)
        mean = acc_ref[...] * inv[None]                                  # (3, TB, 1)

        # Build a lane-aligned (TB, 128) slab: lane 0/1/2 = x/y/z mean, rest 0.
        lane = jax.lax.broadcasted_iota(jnp.int32, out_ref.shape, 1)     # (TB, 128)
        out_ref[...] = jnp.where(
            lane == 0, mean[0],
            jnp.where(lane == 1, mean[1],
                      jnp.where(lane == 2, mean[2], 0.0)))


def net_3d_embed(coords, cloud_mask, *, max_lane_tile=8192):
    """Pallas TPU embedding of a 3D point cloud (masked mean pooling).

    Args:
      coords:        (B, L, 3) float32 -- PyTorch-style point coordinates.
      cloud_mask:    (B, L)    bool/num -- valid-point mask.
      max_lane_tile: largest L-tile (lanes) to keep resident per pipeline step.
    Returns:
      (B, 3) float32 masked-mean embedding.
    """
    coords = jnp.asarray(coords, jnp.float32)
    mask = jnp.asarray(cloud_mask, jnp.float32)

    B, L, C = coords.shape
    assert C == 3, f"expected xyz coordinates, got last dim {C}"

    # --- tile sizing -------------------------------------------------------
    TB = 8                                    # batch tile: one full sublane group
    B_pad = _round_up(B, TB)
    L_pad = _round_up(max(L, 1), 128)         # lane alignment
    max_lane_tile = _round_up(max(max_lane_tile, 128), 128)
    if L_pad <= max_lane_tile:
        TL = L_pad                            # single L step, no padding waste
    else:
        TL = min(max_lane_tile, 2048)         # pipelined 2K-lane tiles
        L_pad = _round_up(L_pad, TL)
    # Per-step VMEM: coords 3*TB*TL*4 + mask TB*TL*4  (<= ~1 MiB at TL=8192);
    # double-buffered this stays far below every generation's scoped VMEM limit,
    # so no vmem_limit_bytes override is set.

    # --- host-side layout glue (see module comment about avoiding this) ----
    coords_c = jnp.transpose(coords, (2, 0, 1))                          # (3, B, L)
    coords_c = jnp.pad(coords_c, ((0, 0), (0, B_pad - B), (0, L_pad - L)))
    mask_p = jnp.pad(mask, ((0, B_pad - B), (0, L_pad - L)))

    grid = (B_pad // TB, L_pad // TL)

    out_padded = pl.pallas_call(
        _net3d_embed_kernel,
        out_shape=jax.ShapeDtypeStruct((B_pad, 128), jnp.float32),
        grid=grid,
        in_specs=[
            pl.BlockSpec((3, TB, TL), lambda b, l: (0, b, l)),   # coords
            pl.BlockSpec((TB, TL), lambda b, l: (b, l)),         # mask
        ],
        # Output block indexed by b only: resident across the L (reduction) axis,
        # written once at the final L step.
        out_specs=pl.BlockSpec((TB, 128), lambda b, l: (b, 0)),
        scratch_shapes=[
            pltpu.VMEM((3, TB, 1), jnp.float32),   # coordinate-sum accumulator
            pltpu.VMEM((TB, 1), jnp.float32),      # valid-point count accumulator
        ],
        compiler_params=pltpu.CompilerParams(
            dimension_semantics=("parallel", "arbitrary")),
    )(coords_c, mask_p)

    return out_padded[:B, :3]


def net_3d_forward_reference(coords, cloud_mask):
    """Exact semantics of the reference PyTorch stub: returns None."""
    return None


def _masked_mean_ref(coords, cloud_mask):
    m = jnp.asarray(cloud_mask, jnp.float32)
    c = jnp.asarray(coords, jnp.float32)
    return (c * m[:, :, None]).sum(axis=1) / jnp.maximum(
        m.sum(axis=1, keepdims=True), 1.0)


if __name__ == "__main__":
    key = jax.random.PRNGKey(0)

    # Reference stub behaviour (kept for faithfulness; unused downstream).
    assert net_3d_forward_reference(None, None) is None

    # Tolerance is loosened vs exact division because the kernel uses the EUP
    # approximate reciprocal for the final divide (DMA-bound kernel; divide is free).
    RTOL = ATOL = 2e-2

    # --- Test 1: small PyTorch-style shapes, single grid step --------------
    B, L = 2, 16
    k_coords, k_mask = jax.random.split(key)
    coords = jax.random.normal(k_coords, (B, L, 3), dtype=jnp.float32)
    cloud_mask = jax.random.bernoulli(k_mask, p=0.75, shape=(B, L))

    emb = jax.block_until_ready(net_3d_embed(coords, cloud_mask))
    ref = _masked_mean_ref(coords, cloud_mask)
    np.testing.assert_allclose(np.asarray(emb), np.asarray(ref), rtol=RTOL, atol=ATOL)

    # --- Test 2: exercise the (batch-tile x L-tile) accumulator grid path --
    B2, L2 = 10, 1000
    k_c2, k_m2 = jax.random.split(jax.random.fold_in(key, 1))
    coords2 = jax.random.normal(k_c2, (B2, L2, 3), dtype=jnp.float32)
    cloud_mask2 = jax.random.bernoulli(k_m2, p=0.6, shape=(B2, L2))
    cloud_mask2 = cloud_mask2.at[3].set(False)   # fully-masked cloud -> denom guard

    emb2 = jax.block_until_ready(
        net_3d_embed(coords2, cloud_mask2, max_lane_tile=256))  # grid = (2, 4)
    ref2 = _masked_mean_ref(coords2, cloud_mask2)
    np.testing.assert_allclose(np.asarray(emb2), np.asarray(ref2), rtol=RTOL, atol=ATOL)

    print("KERNEL_OK")
</pallas_src>

<mosaic_0001>
module attributes {stable_mosaic.version = 11 : i64} {
  func.func @_net3d_embed_kernel(%arg0: i32, %arg1: i32, %arg2: memref<3x8x128xf32, #tpu.memory_space<vmem>>, %arg3: memref<8x128xf32, #tpu.memory_space<vmem>>, %arg4: memref<8x128xf32, #tpu.memory_space<vmem>>, %arg5: memref<3x8x1xf32, #tpu.memory_space<vmem>>, %arg6: memref<8x1xf32, #tpu.memory_space<vmem>>) attributes {dimension_semantics = [#tpu.dimension_semantics<parallel>, #tpu.dimension_semantics<arbitrary>], iteration_bounds = array<i64: 1, 1>, scalar_prefetch = 0 : i64, scratch_operands = 2 : i64, tpu.core_type = #tpu.core_type<tc>, window_params = [{transform_indices = @transform_0, window_bounds = array<i64: 3, 8, 128>}, {transform_indices = @transform_1, window_bounds = array<i64: 8, 128>}, {transform_indices = @transform_2, window_bounds = array<i64: 8, 128>}]} {
    %c0_i32 = arith.constant 0 : i32
    %0 = arith.cmpi eq, %arg1, %c0_i32 : i32
    %1 = arith.extui %0 : i1 to i32
    %c0_i32_0 = arith.constant 0 : i32
    %2 = arith.cmpi ne, %1, %c0_i32_0 : i32
    scf.if %2 {
      %cst_18 = arith.constant 0.000000e+00 : f32
      %21 = vector.broadcast %cst_18 : f32 to vector<3x8x1xf32>
      %c0_19 = arith.constant 0 : index
      %c0_20 = arith.constant 0 : index
      %c0_21 = arith.constant 0 : index
      %22 = vector.load %arg5[%c0_19, %c0_20, %c0_21] : memref<3x8x1xf32, #tpu.memory_space<vmem>>, vector<3x8x1xf32>
      tpu.vector_store %arg5[%c0_19, %c0_20, %c0_21], %21 {strides = array<i32>} : memref<3x8x1xf32, #tpu.memory_space<vmem>>, vector<3x8x1xf32>,
      %cst_22 = arith.constant 0.000000e+00 : f32
      %23 = vector.broadcast %cst_22 : f32 to vector<8x1xf32>
      %c0_23 = arith.constant 0 : index
      %c0_24 = arith.constant 0 : index
      %24 = vector.load %arg6[%c0_23, %c0_24] : memref<8x1xf32, #tpu.memory_space<vmem>>, vector<8x1xf32>
      tpu.vector_store %arg6[%c0_23, %c0_24], %23 {strides = array<i32>} : memref<8x1xf32, #tpu.memory_space<vmem>>, vector<8x1xf32>,
    } else {
    }
    %c0 = arith.constant 0 : index
    %c0_1 = arith.constant 0 : index
    %c0_2 = arith.constant 0 : index
    %3 = vector.load %arg2[%c0, %c0_1, %c0_2] : memref<3x8x128xf32, #tpu.memory_space<vmem>>, vector<3x8x128xf32>
    %c0_3 = arith.constant 0 : index
    %c0_4 = arith.constant 0 : index
    %4 = vector.load %arg3[%c0_3, %c0_4] : memref<8x128xf32, #tpu.memory_space<vmem>>, vector<8x128xf32>
    %c0_5 = arith.constant 0 : index
    %c0_6 = arith.constant 0 : index
    %c0_7 = arith.constant 0 : index
    %5 = vector.load %arg5[%c0_5, %c0_6, %c0_7] : memref<3x8x1xf32, #tpu.memory_space<vmem>>, vector<3x8x1xf32>
    %6 = vector.shape_cast %4 : vector<8x128xf32> to vector<1x8x128xf32>
    %7 = vector.broadcast %6 : vector<1x8x128xf32> to vector<3x8x128xf32>
    %8 = arith.mulf %3, %7 : vector<3x8x128xf32>
    %cst = arith.constant dense<0.000000e+00> : vector<3x8xf32>
    %9 = vector.multi_reduction <add>, %8, %cst [2] : vector<3x8x128xf32> to vector<3x8xf32>
    %10 = vector.shape_cast %9 : vector<3x8xf32> to vector<3x8x1xf32>
    %11 = arith.addf %5, %10 : vector<3x8x1xf32>
    %c0_8 = arith.constant 0 : index
    %c0_9 = arith.constant 0 : index
    %c0_10 = arith.constant 0 : index
    %12 = vector.load %arg5[%c0_8, %c0_9, %c0_10] : memref<3x8x1xf32, #tpu.memory_space<vmem>>, vector<3x8x1xf32>
    tpu.vector_store %arg5[%c0_8, %c0_9, %c0_10], %11 {strides = array<i32>} : memref<3x8x1xf32, #tpu.memory_space<vmem>>, vector<3x8x1xf32>,
    %c0_11 = arith.constant 0 : index
    %c0_12 = arith.constant 0 : index
    %13 = vector.load %arg6[%c0_11, %c0_12] : memref<8x1xf32, #tpu.memory_space<vmem>>, vector<8x1xf32>
    %cst_13 = arith.constant dense<0.000000e+00> : vector<8xf32>
    %14 = vector.multi_reduction <add>, %4, %cst_13 [1] : vector<8x128xf32> to vector<8xf32>
    %15 = vector.shape_cast %14 : vector<8xf32> to vector<8x1xf32>
    %16 = arith.addf %13, %15 : vector<8x1xf32>
    %c0_14 = arith.constant 0 : index
    %c0_15 = arith.constant 0 : index
    %17 = vector.load %arg6[%c0_14, %c0_15] : memref<8x1xf32, #tpu.memory_space<vmem>>, vector<8x1xf32>
    tpu.vector_store %arg6[%c0_14, %c0_15], %16 {strides = array<i32>} : memref<8x1xf32, #tpu.memory_space<vmem>>, vector<8x1xf32>,
    %c0_i32_16 = arith.constant 0 : i32
    %18 = arith.cmpi eq, %arg1, %c0_i32_16 : i32
    %19 = arith.extui %18 : i1 to i32
    %c0_i32_17 = arith.constant 0 : i32
    %20 = arith.cmpi ne, %19, %c0_i32_17 : i32
    scf.if %20 {
      %c0_18 = arith.constant 0 : index
      %c0_19 = arith.constant 0 : index
      %21 = vector.load %arg6[%c0_18, %c0_19] : memref<8x1xf32, #tpu.memory_space<vmem>>, vector<8x1xf32>
      %cst_20 = arith.constant 1.000000e+00 : f32
      %22 = vector.broadcast %cst_20 : f32 to vector<8x1xf32>
      %23 = arith.maximumf %21, %22 : vector<8x1xf32>
      %24 = tpu.reciprocal %23 {approx = true} : vector<8x1xf32> -> vector<8x1xf32>
      %c0_21 = arith.constant 0 : index
      %c0_22 = arith.constant 0 : index
      %c0_23 = arith.constant 0 : index
      %25 = vector.load %arg5[%c0_21, %c0_22, %c0_23] : memref<3x8x1xf32, #tpu.memory_space<vmem>>, vector<3x8x1xf32>
      %26 = vector.shape_cast %24 : vector<8x1xf32> to vector<1x8x1xf32>
      %27 = vector.broadcast %26 : vector<1x8x1xf32> to vector<3x8x1xf32>
      %28 = arith.mulf %25, %27 : vector<3x8x1xf32>
      %29 = tpu.iota {dimensions = array<i32: 1>} : vector<8x128xi32>
      %c0_i32_24 = arith.constant 0 : i32
      %30 = vector.broadcast %c0_i32_24 : i32 to vector<8x128xi32>
      %31 = arith.cmpi eq, %29, %30 : vector<8x128xi32>
      %32 = vector.extract_strided_slice %28 {offsets = [0, 0, 0], sizes = [1, 8, 1], strides = [1, 1, 1]} : vector<3x8x1xf32> to vector<1x8x1xf32>
      %33 = vector.shape_cast %32 : vector<1x8x1xf32> to vector<8x1xf32>
      %c1_i32 = arith.constant 1 : i32
      %34 = vector.broadcast %c1_i32 : i32 to vector<8x128xi32>
      %35 = arith.cmpi eq, %29, %34 : vector<8x128xi32>
      %36 = vector.extract_strided_slice %28 {offsets = [1, 0, 0], sizes = [1, 8, 1], strides = [1, 1, 1]} : vector<3x8x1xf32> to vector<1x8x1xf32>
      %37 = vector.shape_cast %36 : vector<1x8x1xf32> to vector<8x1xf32>
      %c2_i32 = arith.constant 2 : i32
      %38 = vector.broadcast %c2_i32 : i32 to vector<8x128xi32>
      %39 = arith.cmpi eq, %29, %38 : vector<8x128xi32>
      %40 = vector.extract_strided_slice %28 {offsets = [2, 0, 0], sizes = [1, 8, 1], strides = [1, 1, 1]} : vector<3x8x1xf32> to vector<1x8x1xf32>
      %41 = vector.shape_cast %40 : vector<1x8x1xf32> to vector<8x1xf32>
      %cst_25 = arith.constant 0.000000e+00 : f32
      %42 = vector.shape_cast %41 : vector<8x1xf32> to vector<8x1xf32>
      %43 = vector.broadcast %42 : vector<8x1xf32> to vector<8x128xf32>
      %44 = vector.broadcast %cst_25 : f32 to vector<8x128xf32>
      %45 = arith.select %39, %43, %44 : vector<8x128xi1>, vector<8x128xf32>
      %46 = vector.shape_cast %37 : vector<8x1xf32> to vector<8x1xf32>
      %47 = vector.broadcast %46 : vector<8x1xf32> to vector<8x128xf32>
      %48 = arith.select %35, %47, %45 : vector<8x128xi1>, vector<8x128xf32>
      %49 = vector.shape_cast %33 : vector<8x1xf32> to vector<8x1xf32>
      %50 = vector.broadcast %49 : vector<8x1xf32> to vector<8x128xf32>
      %51 = arith.select %31, %50, %48 : vector<8x128xi1>, vector<8x128xf32>
      %c0_26 = arith.constant 0 : index
      %c0_27 = arith.constant 0 : index
      %52 = vector.load %arg4[%c0_26, %c0_27] : memref<8x128xf32, #tpu.memory_space<vmem>>, vector<8x128xf32>
      tpu.vector_store %arg4[%c0_26, %c0_27], %51 {strides = array<i32>} : memref<8x128xf32, #tpu.memory_space<vmem>>, vector<8x128xf32>,
    } else {
    }
    return
  }
  func.func @transform_0(%arg0: i32, %arg1: i32) -> (i32, i32, i32) {
    %c0_i32 = arith.constant 0 : i32
    %c0_i32_0 = arith.constant 0 : i32
    return %c0_i32, %arg0, %arg1 : i32, i32, i32
  }
  func.func @transform_1(%arg0: i32, %arg1: i32) -> (i32, i32) {
    %c0_i32 = arith.constant 0 : i32
    return %arg0, %arg1 : i32, i32
  }
  func.func @transform_2(%arg0: i32, %arg1: i32) -> (i32, i32) {
    %c0_i32 = arith.constant 0 : i32
    %c0_i32_0 = arith.constant 0 : i32
    return %arg0, %c0_i32 : i32, i32
  }
}

</mosaic_0001>

<llo_original>
// kernel: tpu_custom_call.1
$region0: #{tpu_custom_call.1}
  #allocation0 [shape = 'u32[]', space=smem, size = 0x4, offset = 0x4, fixed_abs, tag = 'smem constant byte address 0x4 - core index']
  #allocation1 [shape = 'u32[72,128]{1,0:T(1,128)}', space=vmem, size = 0x9000, scoped, tag = 'internal scratch']
  #allocation2 [shape = 'f32[3,8,1]{2,1,0:T(8,128)}', space=vmem, size = 0x3000, scoped, tag = 'scratch operand']
  #allocation3 [shape = 'f32[8,1]{1,0:T(8,128)}', space=vmem, size = 0x1000, scoped, tag = 'scratch operand']
  %s0 = inlined_call_operand.hbm [shape: f32[3,8,128], index: 0, kind: input, shape index: {}]
  %s1 = inlined_call_operand.hbm [shape: f32[8,128], index: 1, kind: input, shape index: {}]
  %s2 = inlined_call_operand.hbm [shape: f32[8,128], index: 2, kind: output, shape index: {}]
  %s3 = sld [smem:[#allocation0]]
  $region34: #{tpu_custom_call.1} parent=0
    _
  %s5 = ssub.s32 1, %s3
  %s6 = scalar_select 0, %s5, %s3
  $region1: #{tpu_custom_call.1} parent=0
    #allocation4 [shape = 'u8[12288]{0}', space=vmem, size = 0x3000, scoped, tag = 'input window, operand 0, single buffered']
    #allocation5 [shape = 's32[1]{0}', space=sflag, size = 0x4, scoped, tag = 'scoped memory for tpu_custom_call.1']
    #allocation6 [shape = 's32[1]{0}', space=sflag, size = 0x4, scoped, tag = 'scoped memory for tpu_custom_call.1']
    #allocation7 [shape = 'u8[4096]{0}', space=vmem, size = 0x1000, scoped, tag = 'input window, operand 1, single buffered']
    #allocation8 [shape = 's32[1]{0}', space=sflag, size = 0x4, scoped, tag = 'scoped memory for tpu_custom_call.1']
    #allocation9 [shape = 'u8[4096]{0}', space=vmem, size = 0x1000, scoped, tag = 'output window, operand 0, single buffered']
    %7 = vsyncpa [#allocation5], 0
    %8 = vsyncpa [#allocation8], 0
    %9 = vsyncpa [#allocation6], 0
    // Predicated region
    $region2: #{tpu_custom_call.1} parent=1 // pred_check
      _
    $region3: #{tpu_custom_call.1} parent=1 // pred_check_branch
      %11 = sbr.rel (0) target = $region5
    $region4: #{tpu_custom_call.1} parent=1 // pred_region
      %13 = vsyncadd [#allocation5], 0
      %s14 = sshll.u32 %s0, 4
      %s15 = int_to_ptr.hbm [resolvable:$true] %s14
      %s16 = sshll.u32 [#allocation4], 4
      %s17 = int_to_ptr.vmem [resolvable:$true] %s16
      %22 = dma.hbm_to_vmem [thread:$0]  %s15, 384, %s17, [#allocation5], 128, 128, 8
    $region5: #{tpu_custom_call.1} parent=1 // pred_fallthru
      _
    // Predicated region
    $region6: #{tpu_custom_call.1} parent=1 // pred_check
      _
    $region7: #{tpu_custom_call.1} parent=1 // pred_check_branch
      %24 = sbr.rel (0) target = $region9
    $region8: #{tpu_custom_call.1} parent=1 // pred_region
      %26 = vsyncadd [#allocation8], 0
      %s28 = sshll.u32 %s1, 4
      %s29 = int_to_ptr.hbm [resolvable:$true] %s28
      %s30 = sshll.u32 [#allocation7], 4
      %s31 = int_to_ptr.vmem [resolvable:$true] %s30
      %33 = dma.hbm_to_vmem [thread:$0]  %s29, 128, %s31, [#allocation8]
    $region9: #{tpu_custom_call.1} parent=1 // pred_fallthru
      _
    // Predicated region
    $region10: #{tpu_custom_call.1} parent=1 // pred_check
      _
    $region11: #{tpu_custom_call.1} parent=1 // pred_check_branch
      %35 = sbr.rel (0) target = $region13
    $region12: #{tpu_custom_call.1} parent=1 // pred_region
      %37 = dma.done [#allocation5], 384
    $region13: #{tpu_custom_call.1} parent=1 // pred_fallthru
      _
    // Predicated region
    $region14: #{tpu_custom_call.1} parent=1 // pred_check
      _
    $region15: #{tpu_custom_call.1} parent=1 // pred_check_branch
      %39 = sbr.rel (0) target = $region17
    $region16: #{tpu_custom_call.1} parent=1 // pred_region
      %41 = dma.done [#allocation8], 128
    $region17: #{tpu_custom_call.1} parent=1 // pred_fallthru
      _
    %p42 = scmp.eq.s32.totalorder 0, 0
    // Predicated region
    $region18: #{tpu_custom_call.1} parent=1 // pred_check
      %p43 = pneg %p42
    $region19: #{tpu_custom_call.1} parent=1 // pred_check_branch
      %45 = sbr.rel (%p43) target = $region21
    $region20: #{tpu_custom_call.1} parent=1 // pred_region
      %vm46 = vcmask 7168
      %47 = vst.msk [vmem:[#allocation2] sm:$0xff] %vm46, 0.0
      %48 = vst.msk [vmem:[#allocation2 + $0x8] sm:$0xff] %vm46, 0.0
      %49 = vst.msk [vmem:[#allocation2 + $0x10] sm:$0xff] %vm46, 0.0
      %50 = vst.msk [vmem:[#allocation3] sm:$0xff] %vm46, 0.0
    $region21: #{tpu_custom_call.1} parent=1 // pred_fallthru
      _
    %v51 = vld [vmem:[#allocation4] sm:$0xff]
    %v52 = vld [vmem:[#allocation4 + $0x8] sm:$0xff]
    %v53 = vld [vmem:[#allocation4 + $0x10] sm:$0xff]
    %v54 = vld [vmem:[#allocation7] sm:$0xff]
    %v55 = vld [vmem:[#allocation2] sm:$0xff]
    %v56 = vld [vmem:[#allocation2 + $0x8] sm:$0xff]
    %v57 = vld [vmem:[#allocation2 + $0x10] sm:$0xff]
    %v58 = vmul.f32 %v51, %v54
    %v59 = vmul.f32 %v52, %v54
    %v60 = vmul.f32 %v53, %v54
    %61 = vadd.xlane.f32.xlu0 %v58
    %v62 = vpop.xlane.xlu0 %61
    %63 = vadd.xlane.f32.xlu0 %v59
    %v64 = vpop.xlane.xlu0 %63
    %65 = vadd.xlane.f32.xlu0 %v60
    %v66 = vpop.xlane.xlu0 %65
    %v67 = vadd.f32 %v55, %v62
    %v68 = vadd.f32 %v56, %v64
    %v69 = vadd.f32 %v57, %v66
    %vm70 = vcmask 7168
    %71 = vst.msk [vmem:[#allocation2] sm:$0xff] %vm70, %v67
    %72 = vst.msk [vmem:[#allocation2 + $0x8] sm:$0xff] %vm70, %v68
    %73 = vst.msk [vmem:[#allocation2 + $0x10] sm:$0xff] %vm70, %v69
    %v74 = vld [vmem:[#allocation3] sm:$0xff]
    %75 = vadd.xlane.f32.xlu0 %v54
    %v76 = vpop.xlane.xlu0 %75
    %v77 = vadd.f32 %v74, %v76
    %78 = vst.msk [vmem:[#allocation3] sm:$0xff] %vm70, %v77
    // Predicated region
    $region22: #{tpu_custom_call.1} parent=1 // pred_check
      %p79 = pneg %p42
    $region23: #{tpu_custom_call.1} parent=1 // pred_check_branch
      %81 = sbr.rel (%p79) target = $region25
    $region24: #{tpu_custom_call.1} parent=1 // pred_region
      %v82 = vld [vmem:[#allocation3] sm:$0xff]
      %v83 = vmax.f32 %v82, 1.0
      %v84 = vrcp.pop %v83
      %v85 = vld [vmem:[#allocation2] sm:$0xff]
      %v86 = vld [vmem:[#allocation2 + $0x8] sm:$0xff]
      %v87 = vld [vmem:[#allocation2 + $0x10] sm:$0xff]
      %v88 = vmul.f32 %v85, %v84
      %v89 = vmul.f32 %v86, %v84
      %v90 = vmul.f32 %v87, %v84
      %v91 = vlaneseq
      %v92 = vand.u32 %v91, 127
      %vm93 = vcmp.eq.s32.totalorder %v92, 0
      %vm94 = vcmp.eq.s32.totalorder %v92, 1
      %vm95 = vcmp.eq.s32.totalorder %v92, 2
      %97 = vset.pattern.permute.xlu0 0
      %98 = vperm.xlu0 %97, %v90
      %v99 = vpop.permute.xlu0 %98
      %v101 = vsel %vm95, %v99, 0.0
      %103 = vset.pattern.permute.xlu0 0
      %104 = vperm.xlu0 %103, %v89
      %v105 = vpop.permute.xlu0 %104
      %v107 = vsel %vm94, %v105, %v101
      %109 = vset.pattern.permute.xlu0 0
      %110 = vperm.xlu0 %109, %v88
      %v111 = vpop.permute.xlu0 %110
      %v113 = vsel %vm93, %v111, %v107
      %114 = vst [vmem:[#allocation9] sm:$0xff] %v113
    $region25: #{tpu_custom_call.1} parent=1 // pred_fallthru
      _
    // Predicated region
    $region26: #{tpu_custom_call.1} parent=1 // pred_check
      _
    $region27: #{tpu_custom_call.1} parent=1 // pred_check_branch
      %116 = sbr.rel (0) target = $region29
    $region28: #{tpu_custom_call.1} parent=1 // pred_region
      %118 = vsyncadd [#allocation6], 0
      %s120 = sshll.u32 [#allocation9], 4
      %s121 = int_to_ptr.vmem [resolvable:$true] %s120
      %s122 = sshll.u32 %s2, 4
      %s123 = int_to_ptr.hbm [resolvable:$true] %s122
      %125 = dma.vmem_to_hbm [thread:$0]  %s121, 128, %s123, [#allocation6]
    $region29: #{tpu_custom_call.1} parent=1 // pred_fallthru
      _
    // Predicated region
    $region30: #{tpu_custom_call.1} parent=1 // pred_check
      _
    $region31: #{tpu_custom_call.1} parent=1 // pred_check_branch
      %127 = sbr.rel (0) target = $region33
    $region32: #{tpu_custom_call.1} parent=1 // pred_region
      %129 = dma.done [#allocation6], 128
    $region33: #{tpu_custom_call.1} parent=1 // pred_fallthru
      _
    %130 = vsyncpa [#allocation5], 1
    %131 = vsyncpa [#allocation8], 1
    %132 = vsyncpa [#allocation6], 1

</llo_original>
